<compile_context>
chip_gen: v5e
topology: v5e:2x2
jax: 0.10.0
libtpu: 0.0.40
codegen_flags: <defaults>
</compile_context>

<pallas_src>
import jax
import jax.numpy as jnp
from jax.experimental import pallas as pl
from jax.experimental.pallas import tpu as pltpu

N_LAYERS = 5    # distinct Linear(10, 10) modules actually used (indices 0..4)
N_APPLY = 10    # iterations of the forward loop
FEAT = 10       # feature dim fixed by the module


def _mymodule_kernel(xT_ref, w_ref, b_ref, oT_ref):
    # xT_ref: (F, TB)  lane-dense (batch on lanes)
    # w_ref:  (L, F, F)  un-transposed nn.Linear weights
    # b_ref:  (L, F, 1)  biases, shaped to broadcast across lanes
    # oT_ref: (F, TB)
    xT = xT_ref[...].astype(jnp.float32)
    w_all = w_ref[...].astype(jnp.float32)
    b_all = b_ref[...].astype(jnp.float32)
    for i in range(N_APPLY):            # static trip count -> fully unrolled
        j = i // 2                      # static layer index (matches i // 2)
        # torch Linear: y = x @ W^T + b  <=>  y^T = W @ x^T + b[:, None]
        yT = jnp.dot(w_all[j], xT, preferred_element_type=jnp.float32) + b_all[j]
        xT = yT + xT                    # residual add
    oT_ref[...] = xT.astype(oT_ref.dtype)


def mymodule_forward(x, w_stack, b_stack, *, max_tile_b=4096):
    """x: (B, 10). w_stack: (5, 10, 10). b_stack: (5, 10). Returns (B, 10)."""
    B, F = x.shape
    L = w_stack.shape[0]

    # Lane-dense batch tile: multiple of 128.  Keep >= 2 grid steps when the
    # batch is big enough so the "parallel" axis shards across both v7x TCs.
    if B <= 128:
        tb = 128
    else:
        tb = min(max_tile_b, 128 * pl.cdiv(pl.cdiv(B, 2), 128))
    Bp = pl.cdiv(B, tb) * tb
    grid = (Bp // tb,)

    # Transposed, zero-padded input: batch on the last (lane) axis.
    xT = jnp.zeros((F, Bp), dtype=x.dtype).at[:, :B].set(x.T)
    b3 = b_stack[:, :, None]            # (L, F, 1) -> broadcasts over lanes

    # Physical (sublane/lane padded) traffic estimate for this mem-bound call.
    itemsize = jnp.dtype(x.dtype).itemsize
    f_pad = ((F + 7) // 8) * 8
    bytes_x = f_pad * Bp * itemsize
    bytes_params = 2 * L * f_pad * 128 * 4   # weights + biases, lane-padded
    cost = pl.CostEstimate(
        flops=2 * N_APPLY * Bp * F * F + 2 * N_APPLY * Bp * F,
        transcendentals=0,
        bytes_accessed=2 * bytes_x + bytes_params,
    )

    oT = pl.pallas_call(
        _mymodule_kernel,
        out_shape=jax.ShapeDtypeStruct((F, Bp), x.dtype),
        grid_spec=pltpu.PrefetchScalarGridSpec(
            num_scalar_prefetch=0,
            grid=grid,
            in_specs=[
                pl.BlockSpec((F, tb), lambda i: (0, i)),        # x^T tile
                pl.BlockSpec((L, F, F), lambda i: (0, 0, 0)),   # all weights
                pl.BlockSpec((L, F, 1), lambda i: (0, 0, 0)),   # all biases
            ],
            out_specs=pl.BlockSpec((F, tb), lambda i: (0, i)),
        ),
        compiler_params=pltpu.CompilerParams(
            dimension_semantics=("parallel",),  # shard batch tiles across TCs
        ),
        cost_estimate=cost,
    )(xT, w_stack, b3)

    # Drop batch padding and return to the original (B, F) layout.
    return oT[:, :B].T


if __name__ == "__main__":
    key = jax.random.PRNGKey(0)
    kx, kw, kb = jax.random.split(key, 3)

    B, F = 8, FEAT  # small batch, feature dim fixed at 10 by the module
    x = jax.random.normal(kx, (B, F), dtype=jnp.float32)
    # Small-scale weights so 10 residual applications stay numerically tame.
    w_stack = 0.1 * jax.random.normal(kw, (N_LAYERS, F, F), dtype=jnp.float32)
    b_stack = 0.1 * jax.random.normal(kb, (N_LAYERS, F), dtype=jnp.float32)

    out = jax.block_until_ready(mymodule_forward(x, w_stack, b_stack))

    # Pure-JAX reference matching the PyTorch forward exactly.
    ref = x
    for i in range(N_APPLY):
        j = i // 2
        ref = ref @ w_stack[j].T + b_stack[j] + ref

    assert out.shape == x.shape and out.dtype == x.dtype
    assert jnp.allclose(out, ref, atol=1e-4, rtol=1e-4)

    print("KERNEL_OK")
</pallas_src>

<mosaic_0001>
module attributes {stable_mosaic.version = 11 : i64} {
  func.func @_mymodule_kernel(%arg0: i32, %arg1: memref<10x128xf32, #tpu.memory_space<vmem>>, %arg2: memref<5x10x10xf32, #tpu.memory_space<vmem>>, %arg3: memref<5x10x1xf32, #tpu.memory_space<vmem>>, %arg4: memref<10x128xf32, #tpu.memory_space<vmem>>) attributes {dimension_semantics = [#tpu.dimension_semantics<parallel>], iteration_bounds = array<i64: 1>, scalar_prefetch = 0 : i64, scratch_operands = 0 : i64, tpu.core_type = #tpu.core_type<tc>, window_params = [{transform_indices = @transform_0, window_bounds = array<i64: 10, 128>}, {pipeline_mode = #tpu.pipeline_mode<synchronous>, transform_indices = @transform_1, window_bounds = array<i64: 5, 10, 10>}, {pipeline_mode = #tpu.pipeline_mode<synchronous>, transform_indices = @transform_2, window_bounds = array<i64: 5, 10, 1>}, {transform_indices = @transform_3, window_bounds = array<i64: 10, 128>}]} {
    %c0 = arith.constant 0 : index
    %c0_0 = arith.constant 0 : index
    %0 = vector.load %arg1[%c0, %c0_0] : memref<10x128xf32, #tpu.memory_space<vmem>>, vector<10x128xf32>
    %c0_1 = arith.constant 0 : index
    %c0_2 = arith.constant 0 : index
    %c0_3 = arith.constant 0 : index
    %1 = vector.load %arg2[%c0_1, %c0_2, %c0_3] : memref<5x10x10xf32, #tpu.memory_space<vmem>>, vector<5x10x10xf32>
    %c0_4 = arith.constant 0 : index
    %c0_5 = arith.constant 0 : index
    %c0_6 = arith.constant 0 : index
    %2 = vector.load %arg3[%c0_4, %c0_5, %c0_6] : memref<5x10x1xf32, #tpu.memory_space<vmem>>, vector<5x10x1xf32>
    %3 = vector.extract_strided_slice %1 {offsets = [0, 0, 0], sizes = [1, 10, 10], strides = [1, 1, 1]} : vector<5x10x10xf32> to vector<1x10x10xf32>
    %4 = vector.shape_cast %3 : vector<1x10x10xf32> to vector<10x10xf32>
    %cst = arith.constant dense<0.000000e+00> : vector<10x128xf32>
    %5 = tpu.matmul %4, %0, %cst {dimension_numbers = #tpu.dot_dimension_numbers<[1], [0], [0], [1], [0, 0, 1, 1], [], []>} : vector<10x10xf32>, vector<10x128xf32>, vector<10x128xf32> -> vector<10x128xf32>
    %6 = vector.extract_strided_slice %2 {offsets = [0, 0, 0], sizes = [1, 10, 1], strides = [1, 1, 1]} : vector<5x10x1xf32> to vector<1x10x1xf32>
    %7 = vector.shape_cast %6 : vector<1x10x1xf32> to vector<10x1xf32>
    %8 = vector.broadcast %7 : vector<10x1xf32> to vector<10x128xf32>
    %9 = arith.addf %5, %8 : vector<10x128xf32>
    %10 = arith.addf %9, %0 : vector<10x128xf32>
    %11 = vector.extract_strided_slice %1 {offsets = [0, 0, 0], sizes = [1, 10, 10], strides = [1, 1, 1]} : vector<5x10x10xf32> to vector<1x10x10xf32>
    %12 = vector.shape_cast %11 : vector<1x10x10xf32> to vector<10x10xf32>
    %cst_7 = arith.constant dense<0.000000e+00> : vector<10x128xf32>
    %13 = tpu.matmul %12, %10, %cst_7 {dimension_numbers = #tpu.dot_dimension_numbers<[1], [0], [0], [1], [0, 0, 1, 1], [], []>} : vector<10x10xf32>, vector<10x128xf32>, vector<10x128xf32> -> vector<10x128xf32>
    %14 = vector.extract_strided_slice %2 {offsets = [0, 0, 0], sizes = [1, 10, 1], strides = [1, 1, 1]} : vector<5x10x1xf32> to vector<1x10x1xf32>
    %15 = vector.shape_cast %14 : vector<1x10x1xf32> to vector<10x1xf32>
    %16 = vector.broadcast %15 : vector<10x1xf32> to vector<10x128xf32>
    %17 = arith.addf %13, %16 : vector<10x128xf32>
    %18 = arith.addf %17, %10 : vector<10x128xf32>
    %19 = vector.extract_strided_slice %1 {offsets = [1, 0, 0], sizes = [1, 10, 10], strides = [1, 1, 1]} : vector<5x10x10xf32> to vector<1x10x10xf32>
    %20 = vector.shape_cast %19 : vector<1x10x10xf32> to vector<10x10xf32>
    %cst_8 = arith.constant dense<0.000000e+00> : vector<10x128xf32>
    %21 = tpu.matmul %20, %18, %cst_8 {dimension_numbers = #tpu.dot_dimension_numbers<[1], [0], [0], [1], [0, 0, 1, 1], [], []>} : vector<10x10xf32>, vector<10x128xf32>, vector<10x128xf32> -> vector<10x128xf32>
    %22 = vector.extract_strided_slice %2 {offsets = [1, 0, 0], sizes = [1, 10, 1], strides = [1, 1, 1]} : vector<5x10x1xf32> to vector<1x10x1xf32>
    %23 = vector.shape_cast %22 : vector<1x10x1xf32> to vector<10x1xf32>
    %24 = vector.broadcast %23 : vector<10x1xf32> to vector<10x128xf32>
    %25 = arith.addf %21, %24 : vector<10x128xf32>
    %26 = arith.addf %25, %18 : vector<10x128xf32>
    %27 = vector.extract_strided_slice %1 {offsets = [1, 0, 0], sizes = [1, 10, 10], strides = [1, 1, 1]} : vector<5x10x10xf32> to vector<1x10x10xf32>
    %28 = vector.shape_cast %27 : vector<1x10x10xf32> to vector<10x10xf32>
    %cst_9 = arith.constant dense<0.000000e+00> : vector<10x128xf32>
    %29 = tpu.matmul %28, %26, %cst_9 {dimension_numbers = #tpu.dot_dimension_numbers<[1], [0], [0], [1], [0, 0, 1, 1], [], []>} : vector<10x10xf32>, vector<10x128xf32>, vector<10x128xf32> -> vector<10x128xf32>
    %30 = vector.extract_strided_slice %2 {offsets = [1, 0, 0], sizes = [1, 10, 1], strides = [1, 1, 1]} : vector<5x10x1xf32> to vector<1x10x1xf32>
    %31 = vector.shape_cast %30 : vector<1x10x1xf32> to vector<10x1xf32>
    %32 = vector.broadcast %31 : vector<10x1xf32> to vector<10x128xf32>
    %33 = arith.addf %29, %32 : vector<10x128xf32>
    %34 = arith.addf %33, %26 : vector<10x128xf32>
    %35 = vector.extract_strided_slice %1 {offsets = [2, 0, 0], sizes = [1, 10, 10], strides = [1, 1, 1]} : vector<5x10x10xf32> to vector<1x10x10xf32>
    %36 = vector.shape_cast %35 : vector<1x10x10xf32> to vector<10x10xf32>
    %cst_10 = arith.constant dense<0.000000e+00> : vector<10x128xf32>
    %37 = tpu.matmul %36, %34, %cst_10 {dimension_numbers = #tpu.dot_dimension_numbers<[1], [0], [0], [1], [0, 0, 1, 1], [], []>} : vector<10x10xf32>, vector<10x128xf32>, vector<10x128xf32> -> vector<10x128xf32>
    %38 = vector.extract_strided_slice %2 {offsets = [2, 0, 0], sizes = [1, 10, 1], strides = [1, 1, 1]} : vector<5x10x1xf32> to vector<1x10x1xf32>
    %39 = vector.shape_cast %38 : vector<1x10x1xf32> to vector<10x1xf32>
    %40 = vector.broadcast %39 : vector<10x1xf32> to vector<10x128xf32>
    %41 = arith.addf %37, %40 : vector<10x128xf32>
    %42 = arith.addf %41, %34 : vector<10x128xf32>
    %43 = vector.extract_strided_slice %1 {offsets = [2, 0, 0], sizes = [1, 10, 10], strides = [1, 1, 1]} : vector<5x10x10xf32> to vector<1x10x10xf32>
    %44 = vector.shape_cast %43 : vector<1x10x10xf32> to vector<10x10xf32>
    %cst_11 = arith.constant dense<0.000000e+00> : vector<10x128xf32>
    %45 = tpu.matmul %44, %42, %cst_11 {dimension_numbers = #tpu.dot_dimension_numbers<[1], [0], [0], [1], [0, 0, 1, 1], [], []>} : vector<10x10xf32>, vector<10x128xf32>, vector<10x128xf32> -> vector<10x128xf32>
    %46 = vector.extract_strided_slice %2 {offsets = [2, 0, 0], sizes = [1, 10, 1], strides = [1, 1, 1]} : vector<5x10x1xf32> to vector<1x10x1xf32>
    %47 = vector.shape_cast %46 : vector<1x10x1xf32> to vector<10x1xf32>
    %48 = vector.broadcast %47 : vector<10x1xf32> to vector<10x128xf32>
    %49 = arith.addf %45, %48 : vector<10x128xf32>
    %50 = arith.addf %49, %42 : vector<10x128xf32>
    %51 = vector.extract_strided_slice %1 {offsets = [3, 0, 0], sizes = [1, 10, 10], strides = [1, 1, 1]} : vector<5x10x10xf32> to vector<1x10x10xf32>
    %52 = vector.shape_cast %51 : vector<1x10x10xf32> to vector<10x10xf32>
    %cst_12 = arith.constant dense<0.000000e+00> : vector<10x128xf32>
    %53 = tpu.matmul %52, %50, %cst_12 {dimension_numbers = #tpu.dot_dimension_numbers<[1], [0], [0], [1], [0, 0, 1, 1], [], []>} : vector<10x10xf32>, vector<10x128xf32>, vector<10x128xf32> -> vector<10x128xf32>
    %54 = vector.extract_strided_slice %2 {offsets = [3, 0, 0], sizes = [1, 10, 1], strides = [1, 1, 1]} : vector<5x10x1xf32> to vector<1x10x1xf32>
    %55 = vector.shape_cast %54 : vector<1x10x1xf32> to vector<10x1xf32>
    %56 = vector.broadcast %55 : vector<10x1xf32> to vector<10x128xf32>
    %57 = arith.addf %53, %56 : vector<10x128xf32>
    %58 = arith.addf %57, %50 : vector<10x128xf32>
    %59 = vector.extract_strided_slice %1 {offsets = [3, 0, 0], sizes = [1, 10, 10], strides = [1, 1, 1]} : vector<5x10x10xf32> to vector<1x10x10xf32>
    %60 = vector.shape_cast %59 : vector<1x10x10xf32> to vector<10x10xf32>
    %cst_13 = arith.constant dense<0.000000e+00> : vector<10x128xf32>
    %61 = tpu.matmul %60, %58, %cst_13 {dimension_numbers = #tpu.dot_dimension_numbers<[1], [0], [0], [1], [0, 0, 1, 1], [], []>} : vector<10x10xf32>, vector<10x128xf32>, vector<10x128xf32> -> vector<10x128xf32>
    %62 = vector.extract_strided_slice %2 {offsets = [3, 0, 0], sizes = [1, 10, 1], strides = [1, 1, 1]} : vector<5x10x1xf32> to vector<1x10x1xf32>
    %63 = vector.shape_cast %62 : vector<1x10x1xf32> to vector<10x1xf32>
    %64 = vector.broadcast %63 : vector<10x1xf32> to vector<10x128xf32>
    %65 = arith.addf %61, %64 : vector<10x128xf32>
    %66 = arith.addf %65, %58 : vector<10x128xf32>
    %67 = vector.extract_strided_slice %1 {offsets = [4, 0, 0], sizes = [1, 10, 10], strides = [1, 1, 1]} : vector<5x10x10xf32> to vector<1x10x10xf32>
    %68 = vector.shape_cast %67 : vector<1x10x10xf32> to vector<10x10xf32>
    %cst_14 = arith.constant dense<0.000000e+00> : vector<10x128xf32>
    %69 = tpu.matmul %68, %66, %cst_14 {dimension_numbers = #tpu.dot_dimension_numbers<[1], [0], [0], [1], [0, 0, 1, 1], [], []>} : vector<10x10xf32>, vector<10x128xf32>, vector<10x128xf32> -> vector<10x128xf32>
    %70 = vector.extract_strided_slice %2 {offsets = [4, 0, 0], sizes = [1, 10, 1], strides = [1, 1, 1]} : vector<5x10x1xf32> to vector<1x10x1xf32>
    %71 = vector.shape_cast %70 : vector<1x10x1xf32> to vector<10x1xf32>
    %72 = vector.broadcast %71 : vector<10x1xf32> to vector<10x128xf32>
    %73 = arith.addf %69, %72 : vector<10x128xf32>
    %74 = arith.addf %73, %66 : vector<10x128xf32>
    %75 = vector.extract_strided_slice %1 {offsets = [4, 0, 0], sizes = [1, 10, 10], strides = [1, 1, 1]} : vector<5x10x10xf32> to vector<1x10x10xf32>
    %76 = vector.shape_cast %75 : vector<1x10x10xf32> to vector<10x10xf32>
    %cst_15 = arith.constant dense<0.000000e+00> : vector<10x128xf32>
    %77 = tpu.matmul %76, %74, %cst_15 {dimension_numbers = #tpu.dot_dimension_numbers<[1], [0], [0], [1], [0, 0, 1, 1], [], []>} : vector<10x10xf32>, vector<10x128xf32>, vector<10x128xf32> -> vector<10x128xf32>
    %78 = vector.extract_strided_slice %2 {offsets = [4, 0, 0], sizes = [1, 10, 1], strides = [1, 1, 1]} : vector<5x10x1xf32> to vector<1x10x1xf32>
    %79 = vector.shape_cast %78 : vector<1x10x1xf32> to vector<10x1xf32>
    %80 = vector.broadcast %79 : vector<10x1xf32> to vector<10x128xf32>
    %81 = arith.addf %77, %80 : vector<10x128xf32>
    %82 = arith.addf %81, %74 : vector<10x128xf32>
    %c0_16 = arith.constant 0 : index
    %c0_17 = arith.constant 0 : index
    %83 = vector.load %arg4[%c0_16, %c0_17] : memref<10x128xf32, #tpu.memory_space<vmem>>, vector<10x128xf32>
    tpu.vector_store %arg4[%c0_16, %c0_17], %82 {strides = array<i32>} : memref<10x128xf32, #tpu.memory_space<vmem>>, vector<10x128xf32>,
    return
  }
  func.func @transform_0(%arg0: i32) -> (i32, i32) {
    %c0_i32 = arith.constant 0 : i32
    %c0_i32_0 = arith.constant 0 : i32
    return %c0_i32, %arg0 : i32, i32
  }
  func.func @transform_1(%arg0: i32) -> (i32, i32, i32) {
    %c0_i32 = arith.constant 0 : i32
    %c0_i32_0 = arith.constant 0 : i32
    %c0_i32_1 = arith.constant 0 : i32
    %c0_i32_2 = arith.constant 0 : i32
    return %c0_i32, %c0_i32_0, %c0_i32_1 : i32, i32, i32
  }
  func.func @transform_2(%arg0: i32) -> (i32, i32, i32) {
    %c0_i32 = arith.constant 0 : i32
    %c0_i32_0 = arith.constant 0 : i32
    %c0_i32_1 = arith.constant 0 : i32
    %c0_i32_2 = arith.constant 0 : i32
    return %c0_i32, %c0_i32_0, %c0_i32_1 : i32, i32, i32
  }
  func.func @transform_3(%arg0: i32) -> (i32, i32) {
    %c0_i32 = arith.constant 0 : i32
    %c0_i32_0 = arith.constant 0 : i32
    return %c0_i32, %arg0 : i32, i32
  }
}

</mosaic_0001>

<llo_original>
// kernel: tpu_custom_call.1
$region0: #{tpu_custom_call.1}
  #allocation0 [shape = 'u32[]', space=smem, size = 0x4, offset = 0x4, fixed_abs, tag = 'smem constant byte address 0x4 - core index']
  #allocation1 [shape = 'u32[72,128]{1,0:T(1,128)}', space=vmem, size = 0x9000, scoped, tag = 'internal scratch']
  %s0 = inlined_call_operand.hbm [shape: f32[10,128], index: 0, kind: input, shape index: {}]
  %s1 = inlined_call_operand.vmem [shape: f32[5,10,10], index: 1, kind: input, shape index: {}]
  %s2 = inlined_call_operand.vmem [shape: f32[5,10,1], index: 2, kind: input, shape index: {}]
  %s3 = inlined_call_operand.hbm [shape: f32[10,128], index: 3, kind: output, shape index: {}]
  %s4 = sld [smem:[#allocation0]]
  $region26: #{tpu_custom_call.1} parent=0
    _
  %s6 = ssub.s32 1, %s4
  %s7 = scalar_select 0, %s6, %s4
  $region1: #{tpu_custom_call.1} parent=0
    #allocation2 [shape = 'u8[8192]{0}', space=vmem, size = 0x2000, scoped, tag = 'input window, operand 0, single buffered']
    #allocation3 [shape = 's32[1]{0}', space=sflag, size = 0x4, scoped, tag = 'scoped memory for tpu_custom_call.1']
    #allocation4 [shape = 's32[1]{0}', space=sflag, size = 0x4, scoped, tag = 'scoped memory for tpu_custom_call.1']
    #allocation5 [shape = 'u8[8192]{0}', space=vmem, size = 0x2000, scoped, tag = 'output window, operand 0, single buffered']
    %8 = vsyncpa [#allocation3], 0
    %9 = vsyncpa [#allocation4], 0
    // Predicated region
    $region2: #{tpu_custom_call.1} parent=1 // pred_check
      _
    $region3: #{tpu_custom_call.1} parent=1 // pred_check_branch
      %11 = sbr.rel (0) target = $region5
    $region4: #{tpu_custom_call.1} parent=1 // pred_region
      %13 = vsyncadd [#allocation3], 0
      %s14 = sshll.u32 %s0, 4
      %s15 = int_to_ptr.hbm [resolvable:$true] %s14
      %s16 = sshll.u32 [#allocation2], 4
      %s17 = int_to_ptr.vmem [resolvable:$true] %s16
      %22 = dma.hbm_to_vmem [thread:$0]  %s15, 256, %s17, [#allocation3], 128, 128, 8
    $region5: #{tpu_custom_call.1} parent=1 // pred_fallthru
      _
    // Predicated region
    $region6: #{tpu_custom_call.1} parent=1 // pred_check
      _
    $region7: #{tpu_custom_call.1} parent=1 // pred_check_branch
      %24 = sbr.rel (0) target = $region9
    $region8: #{tpu_custom_call.1} parent=1 // pred_region
      _
    $region9: #{tpu_custom_call.1} parent=1 // pred_fallthru
      _
    // Predicated region
    $region10: #{tpu_custom_call.1} parent=1 // pred_check
      _
    $region11: #{tpu_custom_call.1} parent=1 // pred_check_branch
      %26 = sbr.rel (0) target = $region13
    $region12: #{tpu_custom_call.1} parent=1 // pred_region
      _
    $region13: #{tpu_custom_call.1} parent=1 // pred_fallthru
      _
    // Predicated region
    $region14: #{tpu_custom_call.1} parent=1 // pred_check
      _
    $region15: #{tpu_custom_call.1} parent=1 // pred_check_branch
      %28 = sbr.rel (0) target = $region17
    $region16: #{tpu_custom_call.1} parent=1 // pred_region
      %30 = dma.done [#allocation3], 256
    $region17: #{tpu_custom_call.1} parent=1 // pred_fallthru
      _
    %v31 = vld [vmem:[#allocation2] sm:$0xff]
    %v32 = vld [vmem:[#allocation2 + $0x8] sm:$0x3]
    %v33 = vld [vmem:[%s1] sm:$0xff]
    %v34 = vld [vmem:[%s1 + $0x8] sm:$0x3]
    %v35 = vld [vmem:[%s1 + $0x10] sm:$0xff]
    %v36 = vld [vmem:[%s1 + $0x18] sm:$0x3]
    %v37 = vld [vmem:[%s1 + $0x20] sm:$0xff]
    %v38 = vld [vmem:[%s1 + $0x28] sm:$0x3]
    %v39 = vld [vmem:[%s1 + $0x30] sm:$0xff]
    %v40 = vld [vmem:[%s1 + $0x38] sm:$0x3]
    %v41 = vld [vmem:[%s1 + $0x40] sm:$0xff]
    %v42 = vld [vmem:[%s1 + $0x48] sm:$0x3]
    %v43 = vld [vmem:[%s2] sm:$0xff]
    %v44 = vld [vmem:[%s2 + $0x8] sm:$0x3]
    %v45 = vld [vmem:[%s2 + $0x10] sm:$0xff]
    %v46 = vld [vmem:[%s2 + $0x18] sm:$0x3]
    %v47 = vld [vmem:[%s2 + $0x20] sm:$0xff]
    %v48 = vld [vmem:[%s2 + $0x28] sm:$0x3]
    %v49 = vld [vmem:[%s2 + $0x30] sm:$0xff]
    %v50 = vld [vmem:[%s2 + $0x38] sm:$0x3]
    %v51 = vld [vmem:[%s2 + $0x40] sm:$0xff]
    %v52 = vld [vmem:[%s2 + $0x48] sm:$0x3]
    %54 = vset.pattern.permute.xlu0 0
    %55 = vperm.xlu0 %54, %v43
    %v56 = vpop.permute.xlu0 %55
    %59 = vset.pattern.permute.xlu0 0
    %60 = vperm.xlu0 %59, %v44
    %v61 = vpop.permute.xlu0 %60
    %vm63 = vcmask 80896
    %v65 = vsel %vm63, %v33, 0
    %v68 = vsel %vm63, %v34, 0
    %vm70 = vcmask 1041408
    %v72 = vsel %vm70, %v32, 0
    %74 = vmatpush.msra.mxu0 0.0
    %75 = vmatpush.msra.mxu0 0.0
    %76 = vmatpush.msra.mxu0 0.0
    %77 = vmatpush.msra.mxu0 0.0
    %78 = vmatpush.msra.mxu0 0.0
    %79 = vmatpush.msra.mxu0 0.0
    %80 = vmatpush.msra.mxu0 0.0
    %81 = vmatpush.msra.mxu0 0.0
    %82 = vmatpush.msra.mxu0 0.0
    %83 = vmatpush.msra.mxu0 0.0
    %84 = vmatpush.msra.mxu0 0.0
    %85 = vmatpush.msra.mxu0 0.0
    %86 = vmatpush.msra.mxu0 0.0
    %87 = vmatpush.msra.mxu0 0.0
    %88 = vmatpush.msra.mxu0 %v72
    %89 = vmatpush.msra.mxu0 %v31
    %90 = vmatmul.f32.gmra.mxu0 %v65
    %v91 = vpop.f32.mrf.mxu0
    %v92 = vadd.f32 %v56, %v91
    %93 = vmatmul.f32.gmra.mxu0 %v68
    %v94 = vpop.f32.mrf.mxu0
    %v95 = vadd.f32 %v61, %v94
    %96 = vdwg.mxu0
    %v97 = vadd.f32 %v92, %v31
    %v98 = vadd.f32 %v95, %v32
    %v100 = vsel %vm70, %v98, 0
    %102 = vmatpush.msra.mxu0 0.0
    %103 = vmatpush.msra.mxu0 0.0
    %104 = vmatpush.msra.mxu0 0.0
    %105 = vmatpush.msra.mxu0 0.0
    %106 = vmatpush.msra.mxu0 0.0
    %107 = vmatpush.msra.mxu0 0.0
    %108 = vmatpush.msra.mxu0 0.0
    %109 = vmatpush.msra.mxu0 0.0
    %110 = vmatpush.msra.mxu0 0.0
    %111 = vmatpush.msra.mxu0 0.0
    %112 = vmatpush.msra.mxu0 0.0
    %113 = vmatpush.msra.mxu0 0.0
    %114 = vmatpush.msra.mxu0 0.0
    %115 = vmatpush.msra.mxu0 0.0
    %116 = vmatpush.msra.mxu0 %v100
    %117 = vmatpush.msra.mxu0 %v97
    %118 = vmatmul.f32.gmra.mxu0 %v65
    %v119 = vpop.f32.mrf.mxu0
    %v120 = vadd.f32 %v56, %v119
    %121 = vmatmul.f32.gmra.mxu0 %v68
    %v122 = vpop.f32.mrf.mxu0
    %v123 = vadd.f32 %v61, %v122
    %124 = vdwg.mxu0
    %v125 = vadd.f32 %v120, %v97
    %v126 = vadd.f32 %v123, %v98
    %128 = vset.pattern.permute.xlu0 0
    %129 = vperm.xlu0 %128, %v45
    %v130 = vpop.permute.xlu0 %129
    %133 = vset.pattern.permute.xlu0 0
    %134 = vperm.xlu0 %133, %v46
    %v135 = vpop.permute.xlu0 %134
    %v138 = vsel %vm63, %v35, 0
    %v141 = vsel %vm63, %v36, 0
    %v144 = vsel %vm70, %v126, 0
    %146 = vmatpush.msra.mxu0 0.0
    %147 = vmatpush.msra.mxu0 0.0
    %148 = vmatpush.msra.mxu0 0.0
    %149 = vmatpush.msra.mxu0 0.0
    %150 = vmatpush.msra.mxu0 0.0
    %151 = vmatpush.msra.mxu0 0.0
    %152 = vmatpush.msra.mxu0 0.0
    %153 = vmatpush.msra.mxu0 0.0
    %154 = vmatpush.msra.mxu0 0.0
    %155 = vmatpush.msra.mxu0 0.0
    %156 = vmatpush.msra.mxu0 0.0
    %157 = vmatpush.msra.mxu0 0.0
    %158 = vmatpush.msra.mxu0 0.0
    %159 = vmatpush.msra.mxu0 0.0
    %160 = vmatpush.msra.mxu0 %v144
    %161 = vmatpush.msra.mxu0 %v125
    %162 = vmatmul.f32.gmra.mxu0 %v138
    %v163 = vpop.f32.mrf.mxu0
    %v164 = vadd.f32 %v130, %v163
    %165 = vmatmul.f32.gmra.mxu0 %v141
    %v166 = vpop.f32.mrf.mxu0
    %v167 = vadd.f32 %v135, %v166
    %168 = vdwg.mxu0
    %v169 = vadd.f32 %v164, %v125
    %v170 = vadd.f32 %v167, %v126
    %v172 = vsel %vm70, %v170, 0
    %174 = vmatpush.msra.mxu0 0.0
    %175 = vmatpush.msra.mxu0 0.0
    %176 = vmatpush.msra.mxu0 0.0
    %177 = vmatpush.msra.mxu0 0.0
    %178 = vmatpush.msra.mxu0 0.0
    %179 = vmatpush.msra.mxu0 0.0
    %180 = vmatpush.msra.mxu0 0.0
    %181 = vmatpush.msra.mxu0 0.0
    %182 = vmatpush.msra.mxu0 0.0
    %183 = vmatpush.msra.mxu0 0.0
    %184 = vmatpush.msra.mxu0 0.0
    %185 = vmatpush.msra.mxu0 0.0
    %186 = vmatpush.msra.mxu0 0.0
    %187 = vmatpush.msra.mxu0 0.0
    %188 = vmatpush.msra.mxu0 %v172
    %189 = vmatpush.msra.mxu0 %v169
    %190 = vmatmul.f32.gmra.mxu0 %v138
    %v191 = vpop.f32.mrf.mxu0
    %v192 = vadd.f32 %v130, %v191
    %193 = vmatmul.f32.gmra.mxu0 %v141
    %v194 = vpop.f32.mrf.mxu0
    %v195 = vadd.f32 %v135, %v194
    %196 = vdwg.mxu0
    %v197 = vadd.f32 %v192, %v169
    %v198 = vadd.f32 %v195, %v170
    %200 = vset.pattern.permute.xlu0 0
    %201 = vperm.xlu0 %200, %v47
    %v202 = vpop.permute.xlu0 %201
    %205 = vset.pattern.permute.xlu0 0
    %206 = vperm.xlu0 %205, %v48
    %v207 = vpop.permute.xlu0 %206
    %v210 = vsel %vm63, %v37, 0
    %v213 = vsel %vm63, %v38, 0
    %v216 = vsel %vm70, %v198, 0
    %218 = vmatpush.msra.mxu0 0.0
    %219 = vmatpush.msra.mxu0 0.0
    %220 = vmatpush.msra.mxu0 0.0
    %221 = vmatpush.msra.mxu0 0.0
    %222 = vmatpush.msra.mxu0 0.0
    %223 = vmatpush.msra.mxu0 0.0
    %224 = vmatpush.msra.mxu0 0.0
    %225 = vmatpush.msra.mxu0 0.0
    %226 = vmatpush.msra.mxu0 0.0
    %227 = vmatpush.msra.mxu0 0.0
    %228 = vmatpush.msra.mxu0 0.0
    %229 = vmatpush.msra.mxu0 0.0
    %230 = vmatpush.msra.mxu0 0.0
    %231 = vmatpush.msra.mxu0 0.0
    %232 = vmatpush.msra.mxu0 %v216
    %233 = vmatpush.msra.mxu0 %v197
    %234 = vmatmul.f32.gmra.mxu0 %v210
    %v235 = vpop.f32.mrf.mxu0
    %v236 = vadd.f32 %v202, %v235
    %237 = vmatmul.f32.gmra.mxu0 %v213
    %v238 = vpop.f32.mrf.mxu0
    %v239 = vadd.f32 %v207, %v238
    %240 = vdwg.mxu0
    %v241 = vadd.f32 %v236, %v197
    %v242 = vadd.f32 %v239, %v198
    %v244 = vsel %vm70, %v242, 0
    %246 = vmatpush.msra.mxu0 0.0
    %247 = vmatpush.msra.mxu0 0.0
    %248 = vmatpush.msra.mxu0 0.0
    %249 = vmatpush.msra.mxu0 0.0
    %250 = vmatpush.msra.mxu0 0.0
    %251 = vmatpush.msra.mxu0 0.0
    %252 = vmatpush.msra.mxu0 0.0
    %253 = vmatpush.msra.mxu0 0.0
    %254 = vmatpush.msra.mxu0 0.0
    %255 = vmatpush.msra.mxu0 0.0
    %256 = vmatpush.msra.mxu0 0.0
    %257 = vmatpush.msra.mxu0 0.0
    %258 = vmatpush.msra.mxu0 0.0
    %259 = vmatpush.msra.mxu0 0.0
    %260 = vmatpush.msra.mxu0 %v244
    %261 = vmatpush.msra.mxu0 %v241
    %262 = vmatmul.f32.gmra.mxu0 %v210
    %v263 = vpop.f32.mrf.mxu0
    %v264 = vadd.f32 %v202, %v263
    %265 = vmatmul.f32.gmra.mxu0 %v213
    %v266 = vpop.f32.mrf.mxu0
    %v267 = vadd.f32 %v207, %v266
    %268 = vdwg.mxu0
    %v269 = vadd.f32 %v264, %v241
    %v270 = vadd.f32 %v267, %v242
    %272 = vset.pattern.permute.xlu0 0
    %273 = vperm.xlu0 %272, %v49
    %v274 = vpop.permute.xlu0 %273
    %277 = vset.pattern.permute.xlu0 0
    %278 = vperm.xlu0 %277, %v50
    %v279 = vpop.permute.xlu0 %278
    %v282 = vsel %vm63, %v39, 0
    %v285 = vsel %vm63, %v40, 0
    %v288 = vsel %vm70, %v270, 0
    %290 = vmatpush.msra.mxu0 0.0
    %291 = vmatpush.msra.mxu0 0.0
    %292 = vmatpush.msra.mxu0 0.0
    %293 = vmatpush.msra.mxu0 0.0
    %294 = vmatpush.msra.mxu0 0.0
    %295 = vmatpush.msra.mxu0 0.0
    %296 = vmatpush.msra.mxu0 0.0
    %297 = vmatpush.msra.mxu0 0.0
    %298 = vmatpush.msra.mxu0 0.0
    %299 = vmatpush.msra.mxu0 0.0
    %300 = vmatpush.msra.mxu0 0.0
    %301 = vmatpush.msra.mxu0 0.0
    %302 = vmatpush.msra.mxu0 0.0
    %303 = vmatpush.msra.mxu0 0.0
    %304 = vmatpush.msra.mxu0 %v288
    %305 = vmatpush.msra.mxu0 %v269
    %306 = vmatmul.f32.gmra.mxu0 %v282
    %v307 = vpop.f32.mrf.mxu0
    %v308 = vadd.f32 %v274, %v307
    %309 = vmatmul.f32.gmra.mxu0 %v285
    %v310 = vpop.f32.mrf.mxu0
    %v311 = vadd.f32 %v279, %v310
    %312 = vdwg.mxu0
    %v313 = vadd.f32 %v308, %v269
    %v314 = vadd.f32 %v311, %v270
    %v316 = vsel %vm70, %v314, 0
    %318 = vmatpush.msra.mxu0 0.0
    %319 = vmatpush.msra.mxu0 0.0
    %320 = vmatpush.msra.mxu0 0.0
    %321 = vmatpush.msra.mxu0 0.0
    %322 = vmatpush.msra.mxu0 0.0
    %323 = vmatpush.msra.mxu0 0.0
    %324 = vmatpush.msra.mxu0 0.0
    %325 = vmatpush.msra.mxu0 0.0
    %326 = vmatpush.msra.mxu0 0.0
    %327 = vmatpush.msra.mxu0 0.0
    %328 = vmatpush.msra.mxu0 0.0
    %329 = vmatpush.msra.mxu0 0.0
    %330 = vmatpush.msra.mxu0 0.0
    %331 = vmatpush.msra.mxu0 0.0
    %332 = vmatpush.msra.mxu0 %v316
    %333 = vmatpush.msra.mxu0 %v313
    %334 = vmatmul.f32.gmra.mxu0 %v282
    %v335 = vpop.f32.mrf.mxu0
    %v336 = vadd.f32 %v274, %v335
    %337 = vmatmul.f32.gmra.mxu0 %v285
    %v338 = vpop.f32.mrf.mxu0
    %v339 = vadd.f32 %v279, %v338
    %340 = vdwg.mxu0
    %v341 = vadd.f32 %v336, %v313
    %v342 = vadd.f32 %v339, %v314
    %344 = vset.pattern.permute.xlu0 0
    %345 = vperm.xlu0 %344, %v51
    %v346 = vpop.permute.xlu0 %345
    %349 = vset.pattern.permute.xlu0 0
    %350 = vperm.xlu0 %349, %v52
    %v351 = vpop.permute.xlu0 %350
    %v354 = vsel %vm63, %v41, 0
    %v357 = vsel %vm63, %v42, 0
    %v360 = vsel %vm70, %v342, 0
    %362 = vmatpush.msra.mxu0 0.0
    %363 = vmatpush.msra.mxu0 0.0
    %364 = vmatpush.msra.mxu0 0.0
    %365 = vmatpush.msra.mxu0 0.0
    %366 = vmatpush.msra.mxu0 0.0
    %367 = vmatpush.msra.mxu0 0.0
    %368 = vmatpush.msra.mxu0 0.0
    %369 = vmatpush.msra.mxu0 0.0
    %370 = vmatpush.msra.mxu0 0.0
    %371 = vmatpush.msra.mxu0 0.0
    %372 = vmatpush.msra.mxu0 0.0
    %373 = vmatpush.msra.mxu0 0.0
    %374 = vmatpush.msra.mxu0 0.0
    %375 = vmatpush.msra.mxu0 0.0
    %376 = vmatpush.msra.mxu0 %v360
    %377 = vmatpush.msra.mxu0 %v341
    %378 = vmatmul.f32.gmra.mxu0 %v354
    %v379 = vpop.f32.mrf.mxu0
    %v380 = vadd.f32 %v346, %v379
    %381 = vmatmul.f32.gmra.mxu0 %v357
    %v382 = vpop.f32.mrf.mxu0
    %v383 = vadd.f32 %v351, %v382
    %384 = vdwg.mxu0
    %v385 = vadd.f32 %v380, %v341
    %v386 = vadd.f32 %v383, %v342
    %v388 = vsel %vm70, %v386, 0
    %390 = vmatpush.msra.mxu0 0.0
    %391 = vmatpush.msra.mxu0 0.0
    %392 = vmatpush.msra.mxu0 0.0
    %393 = vmatpush.msra.mxu0 0.0
    %394 = vmatpush.msra.mxu0 0.0
    %395 = vmatpush.msra.mxu0 0.0
    %396 = vmatpush.msra.mxu0 0.0
    %397 = vmatpush.msra.mxu0 0.0
    %398 = vmatpush.msra.mxu0 0.0
    %399 = vmatpush.msra.mxu0 0.0
    %400 = vmatpush.msra.mxu0 0.0
    %401 = vmatpush.msra.mxu0 0.0
    %402 = vmatpush.msra.mxu0 0.0
    %403 = vmatpush.msra.mxu0 0.0
    %404 = vmatpush.msra.mxu0 %v388
    %405 = vmatpush.msra.mxu0 %v385
    %406 = vmatmul.f32.gmra.mxu0 %v354
    %v407 = vpop.f32.mrf.mxu0
    %v408 = vadd.f32 %v346, %v407
    %409 = vmatmul.f32.gmra.mxu0 %v357
    %v410 = vpop.f32.mrf.mxu0
    %v411 = vadd.f32 %v351, %v410
    %412 = vdwg.mxu0
    %v413 = vadd.f32 %v408, %v385
    %v414 = vadd.f32 %v411, %v386
    %415 = vst [vmem:[#allocation5] sm:$0xff] %v413
    %416 = vst [vmem:[#allocation5 + $0x8] sm:$0x3] %v414
    // Predicated region
    $region18: #{tpu_custom_call.1} parent=1 // pred_check
      _
    $region19: #{tpu_custom_call.1} parent=1 // pred_check_branch
      %418 = sbr.rel (0) target = $region21
    $region20: #{tpu_custom_call.1} parent=1 // pred_region
      %420 = vsyncadd [#allocation4], 0
      %s421 = sshll.u32 [#allocation5], 4
      %s422 = int_to_ptr.vmem [resolvable:$true] %s421
      %s423 = sshll.u32 %s3, 4
      %s424 = int_to_ptr.hbm [resolvable:$true] %s423
      %429 = dma.vmem_to_hbm [thread:$0]  %s422, 256, %s424, [#allocation4], 128, 128, 8
    $region21: #{tpu_custom_call.1} parent=1 // pred_fallthru
      _
    // Predicated region
    $region22: #{tpu_custom_call.1} parent=1 // pred_check
      _
    $region23: #{tpu_custom_call.1} parent=1 // pred_check_branch
      %431 = sbr.rel (0) target = $region25
    $region24: #{tpu_custom_call.1} parent=1 // pred_region
      %433 = dma.done [#allocation4], 256
    $region25: #{tpu_custom_call.1} parent=1 // pred_fallthru
      _
    %434 = vsyncpa [#allocation3], 1
    %435 = vsyncpa [#allocation4], 1

</llo_original>
